<compile_context>
chip_gen: v6e
topology: v6e:2x2x1
jax: 0.10.0
libtpu: 0.0.40
codegen_flags: <defaults>
</compile_context>

<pallas_src>
import math

import jax
import jax.numpy as jnp
from jax.experimental import pallas as pl
from jax.experimental.pallas import tpu as pltpu


def _vq_kernel(x_ref, embed_ref, e2h_ref, q_ref, idx_ref):
    x = x_ref[...]                      # (tm, D) rows, native dtype
    e = embed_ref[...]                  # (K, D) codebook, native dtype, resident
    e2h = e2h_ref[...]                  # (1, K) f32, 0.5 * ||embed_k||^2
    tm = x.shape[0]
    k = e.shape[0]

    if x.dtype != e.dtype:              # keep the MXU operands in one dtype
        x = x.astype(e.dtype)

    # argmax_k -(||x||^2 - 2 x.e_k + ||e_k||^2) == argmax_k (x.e_k - 0.5||e_k||^2):
    # the per-row ||x||^2 constant and the positive 2x scale cannot change the
    # argmax, so both are dropped (the 0.5 is folded into e2h in the wrapper).
    xe = jax.lax.dot_general(           # (tm, K) on the MXU; native-dtype pass
        x, e, (((1,), (1,)), ((), ())),
        preferred_element_type=jnp.float32)
    score = xe - e2h                    # (tm, K) f32

    # First-max tie break (matches torch .max(dim=-1).indices / jnp.argmax).
    # Kept as two exact cross-lane reductions: the single-reduce "pack index
    # into low mantissa bits" trick would perturb near-ties vs. the reference.
    max_val = jnp.max(score, axis=-1, keepdims=True)               # (tm, 1)
    lane_iota = jax.lax.broadcasted_iota(jnp.int32, (tm, k), 1)    # (tm, K)
    idx = jnp.min(jnp.where(score == max_val, lane_iota, k),
                  axis=-1, keepdims=True)                          # (tm, 1) int32

    onehot_f32 = (lane_iota == idx).astype(jnp.float32)            # (tm, K)
    onehot_e = onehot_f32 if e.dtype == jnp.float32 else onehot_f32.astype(e.dtype)
    onehot_b = (onehot_e if e.dtype == jnp.bfloat16
                else onehot_f32.astype(jnp.bfloat16))

    # Dequantize: one-hot gather as an MXU matmul in the codebook's own dtype.
    q = jnp.dot(onehot_e, e, preferred_element_type=jnp.float32)   # (tm, D)
    q_ref[...] = q.astype(q_ref.dtype)

    # Lane-dense (1, tm) code-id row via cheap DEFAULT-precision bf16 matmuls
    # (replaces the old ~6-pass Precision.HIGHEST variant).
    def _onehot_select(vals_i32):       # (8, K) integer rows -> (1, tm) f32 exact
        v = vals_i32.astype(jnp.float32).astype(jnp.bfloat16)      # values <= 255
        r = jax.lax.dot_general(v, onehot_b, (((1,), (1,)), ((), ())),
                                preferred_element_type=jnp.float32)  # (8, tm)
        return r[0:1, :]

    code_iota = jax.lax.broadcasted_iota(jnp.int32, (8, k), 1)
    if k <= 256:
        idx_row = _onehot_select(code_iota)                        # exact in bf16
    else:
        lo = _onehot_select(code_iota & 0xFF)                      # idx % 256
        hi = _onehot_select(code_iota >> 8)                        # idx // 256
        idx_row = 256.0 * hi + lo
    idx_ref[...] = (idx_row + 0.5).astype(jnp.int32)               # (1, tm)


def euclidean_codebook_forward(x, embed, *, tm=1024,
                               vmem_limit_bytes=32 * 1024 * 1024):
    """Eval-mode forward of _EuclideanCodebook: returns (quantize, embed_ind)."""
    orig_shape = x.shape
    d = orig_shape[-1]
    k, d_e = embed.shape
    assert d == d_e
    xf = x.reshape(-1, d)
    n = xf.shape[0]

    x_bytes = jnp.dtype(x.dtype).itemsize
    e_bytes = jnp.dtype(embed.dtype).itemsize

    # --- VMEM-aware row-tile selection --------------------------------------
    # Live bytes ~ fixed [double-buffered resident codebook + norm row] plus
    # per-row [~4 (tm,K) f32 temporaries (xe/score/iota/onehot), the
    # double-buffered (tm,D) in/out tiles and the (1,tm) int32 index row].
    budget = int(0.6 * vmem_limit_bytes)
    fixed = 2 * k * d * e_bytes + 2 * 4 * k
    per_row = 16 * k + 4 * d * x_bytes + 8
    avail = max(budget - fixed, 128 * per_row)
    tm_cap = max(128, (min(int(tm), avail // per_row) // 128) * 128)

    if n < 256:
        tm_eff = n                       # one full block: no padding, no tail
    else:
        # >=2 tiles (both TCs on v7x) and ~>=8 tiles for larger inputs so the
        # DMA pipeline always has work; 128-aligned for lane-dense index rows.
        target = max(256, 128 * (-(-n // (8 * 128))))
        at_most_half = max(128, ((n - 1) // 128) * 128)   # guarantees >= 2 tiles
        tm_eff = max(128, min(tm_cap, target, at_most_half))
    num_tiles = pl.cdiv(n, tm_eff)

    # 0.5 * ||embed_k||^2, computed once, f32, VMEM-resident (a few hundred B).
    e2h = 0.5 * jnp.sum(embed.astype(jnp.float32) ** 2, axis=1)[None, :]   # (1,K)

    # TODO(synk): for very large codebooks, single-buffer the resident codebook
    # (pipeline_mode=pl.Buffered(1)) and tile over K with a running max/argmax
    # so K*D no longer has to fit v7x's 64 MiB VMEM.
    q, idx = pl.pallas_call(
        _vq_kernel,
        out_shape=(
            jax.ShapeDtypeStruct((n, d), x.dtype),
            jax.ShapeDtypeStruct((1, num_tiles * tm_eff), jnp.int32),
        ),
        grid_spec=pltpu.PrefetchScalarGridSpec(
            num_scalar_prefetch=0,
            grid=(num_tiles,),
            in_specs=[
                pl.BlockSpec((tm_eff, d), lambda i: (i, 0)),   # x rows
                pl.BlockSpec((k, d), lambda i: (0, 0)),        # codebook (resident)
                pl.BlockSpec((1, k), lambda i: (0, 0)),        # 0.5*||embed||^2
            ],
            out_specs=(
                pl.BlockSpec((tm_eff, d), lambda i: (i, 0)),   # quantized rows
                pl.BlockSpec((1, tm_eff), lambda i: (0, i)),   # lane-dense code ids
            ),
        ),
        compiler_params=pltpu.CompilerParams(
            dimension_semantics=("parallel",),
            vmem_limit_bytes=int(vmem_limit_bytes)),
    )(xf, embed, e2h)

    quantize = q.reshape(orig_shape)
    embed_ind = idx[0, :n].reshape(orig_shape[:-1])
    return quantize, embed_ind


def _reference_dist(xf, embed):
    return -(jnp.sum(xf ** 2, axis=1, keepdims=True)
             - 2.0 * xf @ embed.T
             + jnp.sum(embed ** 2, axis=1)[None, :])


if __name__ == "__main__":
    # Module hyper-parameters (kmeans_init=False -> kaiming_uniform_ init).
    dim = 32
    key = jax.random.PRNGKey(0)
    k_e1, k_e2, k_x1, k_x2, k_x3 = jax.random.split(key, 5)

    # nn.init.kaiming_uniform_ on (codebook_size, dim): bound = sqrt(6 / fan_in).
    bound = math.sqrt(6.0 / dim)
    embed_small = jax.random.uniform(k_e1, (64, dim), jnp.float32, -bound, bound)
    embed_bigk = jax.random.uniform(k_e2, (512, dim), jnp.float32, -bound, bound)

    # Case 1: tiny input, single row tile (exact index parity check).
    # Case 2: multi-tile path (11 tiles of 256 rows), lane-dense index writes.
    # Case 3: K=512 exercises the hi/lo-byte exact index-decode path.
    cases = [
        (jax.random.normal(k_x1, (2, 8, dim), jnp.float32), embed_small, 1024, True),
        (jax.random.normal(k_x2, (4, 704, dim), jnp.float32), embed_small, 256, False),
        (jax.random.normal(k_x3, (2, 64, dim), jnp.float32), embed_bigk, 1024, False),
    ]

    for x, embed, tile, exact in cases:
        codebook_size = embed.shape[0]
        quantize, embed_ind = euclidean_codebook_forward(x, embed, tm=tile)
        quantize = jax.block_until_ready(quantize)
        embed_ind = jax.block_until_ready(embed_ind)

        assert quantize.shape == x.shape
        assert embed_ind.shape == x.shape[:-1]

        xf = x.reshape(-1, dim)
        dist = _reference_dist(xf, embed)
        ind_ref = jnp.argmax(dist, axis=-1)
        flat_ind = embed_ind.reshape(-1)

        # Indices must be valid codes attaining the maximal reference distance
        # (robust to FP near-ties between the two equivalent score formulations).
        assert bool(jnp.all((flat_ind >= 0) & (flat_ind < codebook_size)))
        chosen = jnp.take_along_axis(dist, flat_ind[:, None], axis=1)[:, 0]
        assert bool(jnp.allclose(chosen, dist.max(axis=-1), atol=1e-3, rtol=1e-5))
        # Dequantized vectors must be the selected codebook rows.
        assert bool(jnp.allclose(quantize.reshape(-1, dim), embed[flat_ind],
                                 atol=1e-5, rtol=1e-5))
        if exact:
            assert bool(jnp.array_equal(flat_ind, ind_ref.astype(jnp.int32)))
            assert bool(jnp.allclose(quantize.reshape(-1, dim), embed[ind_ref],
                                     atol=1e-5, rtol=1e-5))

    print("KERNEL_OK")
</pallas_src>

<mosaic_0001>
module attributes {stable_mosaic.version = 11 : i64} {
  func.func @_vq_kernel(%arg0: i32, %arg1: memref<16x32xf32, #tpu.memory_space<vmem>>, %arg2: memref<64x32xf32, #tpu.memory_space<vmem>>, %arg3: memref<1x64xf32, #tpu.memory_space<vmem>>, %arg4: memref<16x32xf32, #tpu.memory_space<vmem>>, %arg5: memref<1x16xi32, #tpu.memory_space<vmem>>) attributes {dimension_semantics = [#tpu.dimension_semantics<parallel>], iteration_bounds = array<i64: 1>, scalar_prefetch = 0 : i64, scratch_operands = 0 : i64, tpu.core_type = #tpu.core_type<tc>, window_params = [{transform_indices = @transform_0, window_bounds = array<i64: 16, 32>}, {pipeline_mode = #tpu.pipeline_mode<synchronous>, transform_indices = @transform_1, window_bounds = array<i64: 64, 32>}, {pipeline_mode = #tpu.pipeline_mode<synchronous>, transform_indices = @transform_2, window_bounds = array<i64: 1, 64>}, {transform_indices = @transform_3, window_bounds = array<i64: 16, 32>}, {transform_indices = @transform_4, window_bounds = array<i64: 1, 16>}]} {
    %c0 = arith.constant 0 : index
    %c0_0 = arith.constant 0 : index
    %0 = vector.load %arg1[%c0, %c0_0] : memref<16x32xf32, #tpu.memory_space<vmem>>, vector<16x32xf32>
    %c0_1 = arith.constant 0 : index
    %c0_2 = arith.constant 0 : index
    %1 = vector.load %arg2[%c0_1, %c0_2] : memref<64x32xf32, #tpu.memory_space<vmem>>, vector<64x32xf32>
    %c0_3 = arith.constant 0 : index
    %c0_4 = arith.constant 0 : index
    %2 = vector.load %arg3[%c0_3, %c0_4] : memref<1x64xf32, #tpu.memory_space<vmem>>, vector<1x64xf32>
    %cst = arith.constant dense<0.000000e+00> : vector<16x64xf32>
    %3 = tpu.matmul %0, %1, %cst {dimension_numbers = #tpu.dot_dimension_numbers<[1], [1], [0], [0], [0, 0, 1, 0], [], []>} : vector<16x32xf32>, vector<64x32xf32>, vector<16x64xf32> -> vector<16x64xf32>
    %4 = vector.broadcast %2 : vector<1x64xf32> to vector<16x64xf32>
    %5 = arith.subf %3, %4 : vector<16x64xf32>
    %cst_5 = arith.constant dense<0xFF800000> : vector<16xf32>
    %6 = vector.multi_reduction <maximumf>, %5, %cst_5 [1] : vector<16x64xf32> to vector<16xf32>
    %7 = vector.shape_cast %6 : vector<16xf32> to vector<16x1xf32>
    %8 = tpu.iota {dimensions = array<i32: 1>} : vector<16x64xi32>
    %9 = vector.broadcast %7 : vector<16x1xf32> to vector<16x64xf32>
    %10 = arith.cmpf oeq, %5, %9 : vector<16x64xf32>
    %c64_i32 = arith.constant 64 : i32
    %11 = vector.broadcast %c64_i32 : i32 to vector<16x64xi32>
    %12 = arith.select %10, %8, %11 : vector<16x64xi1>, vector<16x64xi32>
    %cst_6 = arith.constant dense<2147483647> : vector<16xi32>
    %13 = vector.multi_reduction <minsi>, %12, %cst_6 [1] : vector<16x64xi32> to vector<16xi32>
    %14 = vector.shape_cast %13 : vector<16xi32> to vector<16x1xi32>
    %15 = vector.broadcast %14 : vector<16x1xi32> to vector<16x64xi32>
    %16 = arith.cmpi eq, %8, %15 : vector<16x64xi32>
    %17 = arith.extui %16 : vector<16x64xi1> to vector<16x64xi32>
    %18 = arith.sitofp %17 : vector<16x64xi32> to vector<16x64xf32>
    %19 = arith.truncf %18 : vector<16x64xf32> to vector<16x64xbf16>
    %cst_7 = arith.constant dense<0.000000e+00> : vector<16x32xf32>
    %20 = tpu.matmul %18, %1, %cst_7 {dimension_numbers = #tpu.dot_dimension_numbers<[1], [0], [0], [1], [0, 0, 1, 1], [], []>} : vector<16x64xf32>, vector<64x32xf32>, vector<16x32xf32> -> vector<16x32xf32>
    %c0_8 = arith.constant 0 : index
    %c0_9 = arith.constant 0 : index
    %21 = vector.load %arg4[%c0_8, %c0_9] : memref<16x32xf32, #tpu.memory_space<vmem>>, vector<16x32xf32>
    tpu.vector_store %arg4[%c0_8, %c0_9], %20 {strides = array<i32>} : memref<16x32xf32, #tpu.memory_space<vmem>>, vector<16x32xf32>,
    %22 = tpu.iota {dimensions = array<i32: 1>} : vector<8x64xi32>
    %23 = arith.sitofp %22 : vector<8x64xi32> to vector<8x64xf32>
    %24 = arith.truncf %23 : vector<8x64xf32> to vector<8x64xbf16>
    %cst_10 = arith.constant dense<0.000000e+00> : vector<8x16xf32>
    %25 = tpu.matmul %24, %19, %cst_10 {dimension_numbers = #tpu.dot_dimension_numbers<[1], [1], [0], [0], [0, 0, 1, 0], [], []>} : vector<8x64xbf16>, vector<16x64xbf16>, vector<8x16xf32> -> vector<8x16xf32>
    %26 = vector.extract_strided_slice %25 {offsets = [0, 0], sizes = [1, 16], strides = [1, 1]} : vector<8x16xf32> to vector<1x16xf32>
    %cst_11 = arith.constant 5.000000e-01 : f32
    %27 = vector.broadcast %cst_11 : f32 to vector<1x16xf32>
    %28 = arith.addf %26, %27 : vector<1x16xf32>
    %29 = arith.fptosi %28 : vector<1x16xf32> to vector<1x16xi32>
    %c0_12 = arith.constant 0 : index
    %c0_13 = arith.constant 0 : index
    %30 = vector.load %arg5[%c0_12, %c0_13] : memref<1x16xi32, #tpu.memory_space<vmem>>, vector<1x16xi32>
    tpu.vector_store %arg5[%c0_12, %c0_13], %29 {strides = array<i32>} : memref<1x16xi32, #tpu.memory_space<vmem>>, vector<1x16xi32>,
    return
  }
  func.func @transform_0(%arg0: i32) -> (i32, i32) {
    %c0_i32 = arith.constant 0 : i32
    %c0_i32_0 = arith.constant 0 : i32
    return %arg0, %c0_i32 : i32, i32
  }
  func.func @transform_1(%arg0: i32) -> (i32, i32) {
    %c0_i32 = arith.constant 0 : i32
    %c0_i32_0 = arith.constant 0 : i32
    %c0_i32_1 = arith.constant 0 : i32
    return %c0_i32, %c0_i32_0 : i32, i32
  }
  func.func @transform_2(%arg0: i32) -> (i32, i32) {
    %c0_i32 = arith.constant 0 : i32
    %c0_i32_0 = arith.constant 0 : i32
    %c0_i32_1 = arith.constant 0 : i32
    return %c0_i32, %c0_i32_0 : i32, i32
  }
  func.func @transform_3(%arg0: i32) -> (i32, i32) {
    %c0_i32 = arith.constant 0 : i32
    %c0_i32_0 = arith.constant 0 : i32
    return %arg0, %c0_i32 : i32, i32
  }
  func.func @transform_4(%arg0: i32) -> (i32, i32) {
    %c0_i32 = arith.constant 0 : i32
    %c0_i32_0 = arith.constant 0 : i32
    return %c0_i32, %arg0 : i32, i32
  }
}

</mosaic_0001>

<llo_original>
// kernel: tpu_custom_call.1
$region0: #{tpu_custom_call.1}
  #allocation0 [shape = 'u32[]', space=smem, size = 0x4, offset = 0x4, fixed_abs, tag = 'smem constant byte address 0x4 - core index']
  #allocation1 [shape = 'u32[144,128]{1,0:T(1,128)}', space=vmem, size = 0x12000, scoped, tag = 'internal scratch']
  %s0 = inlined_call_operand.vmem [shape: f32[16,32], index: 0, kind: input, shape index: {}]
  %s1 = inlined_call_operand.vmem [shape: f32[64,32], index: 1, kind: input, shape index: {}]
  %s2 = inlined_call_operand.vmem [shape: f32[1,64], index: 2, kind: input, shape index: {}]
  %s3 = inlined_call_operand.hbm [shape: f32[16,32], index: 3, kind: output, shape index: {0}]
  %s4 = inlined_call_operand.hbm [shape: s32[1,16], index: 4, kind: output, shape index: {1}]
  %5 = xla_tuple %s3, %s4
  %s6 = sld [smem:[#allocation0]]
  $region30: #{tpu_custom_call.1} parent=0
    _
  %s8 = ssub.s32 1, %s6
  %s9 = scalar_select 0, %s8, %s6
  $region1: #{tpu_custom_call.1} parent=0
    #allocation2 [shape = 'u8[8192]{0}', space=vmem, size = 0x2000, scoped, tag = 'output window, operand 0, single buffered']
    #allocation3 [shape = 's32[1]{0}', space=sflag, size = 0x4, scoped, tag = 'scoped memory for tpu_custom_call.1']
    #allocation4 [shape = 'u8[512]{0}', space=vmem, size = 0x400, scoped, tag = 'output window, operand 1, single buffered']
    #allocation5 [shape = 's32[1]{0}', space=sflag, size = 0x4, scoped, tag = 'scoped memory for tpu_custom_call.1']
    %10 = vsyncpa [#allocation3], 0
    %11 = vsyncpa [#allocation5], 0
    // Predicated region
    $region2: #{tpu_custom_call.1} parent=1 // pred_check
      _
    $region3: #{tpu_custom_call.1} parent=1 // pred_check_branch
      %13 = sbr.rel (0) target = $region5
    $region4: #{tpu_custom_call.1} parent=1 // pred_region
      _
    $region5: #{tpu_custom_call.1} parent=1 // pred_fallthru
      _
    // Predicated region
    $region6: #{tpu_custom_call.1} parent=1 // pred_check
      _
    $region7: #{tpu_custom_call.1} parent=1 // pred_check_branch
      %15 = sbr.rel (0) target = $region9
    $region8: #{tpu_custom_call.1} parent=1 // pred_region
      _
    $region9: #{tpu_custom_call.1} parent=1 // pred_fallthru
      _
    // Predicated region
    $region10: #{tpu_custom_call.1} parent=1 // pred_check
      _
    $region11: #{tpu_custom_call.1} parent=1 // pred_check_branch
      %17 = sbr.rel (0) target = $region13
    $region12: #{tpu_custom_call.1} parent=1 // pred_region
      _
    $region13: #{tpu_custom_call.1} parent=1 // pred_fallthru
      _
    %v19 = vld [vmem:[%s0] sm:$0xff]
    %v20 = vld [vmem:[%s0 + $0x8] sm:$0xff]
    %v21 = vld [vmem:[%s1] sm:$0xff]
    %v22 = vld [vmem:[%s1 + $0x8] sm:$0xff]
    %v23 = vld [vmem:[%s1 + $0x10] sm:$0xff]
    %v24 = vld [vmem:[%s1 + $0x18] sm:$0xff]
    %v25 = vld [vmem:[%s1 + $0x20] sm:$0xff]
    %v26 = vld [vmem:[%s1 + $0x28] sm:$0xff]
    %v27 = vld [vmem:[%s1 + $0x30] sm:$0xff]
    %v28 = vld [vmem:[%s1 + $0x38] sm:$0xff]
    %v29 = vld [vmem:[%s2] sm:$0x1]
    %vm30 = vcmask 261120
    %v32 = vsel %vm30, %v19, 0
    %v35 = vsel %vm30, %v20, 0
    %v38 = vsel %vm30, %v21, 0
    %v41 = vsel %vm30, %v22, 0
    %v44 = vsel %vm30, %v23, 0
    %v47 = vsel %vm30, %v24, 0
    %v50 = vsel %vm30, %v25, 0
    %v53 = vsel %vm30, %v26, 0
    %v56 = vsel %vm30, %v27, 0
    %v59 = vsel %vm30, %v28, 0
    %61 = vmatprep.subr.mxu0 0.0
    %62 = vmatpush1.xpose.msra.mxu0 0.0
    %63 = vmatprep.subr.mxu0 0.0
    %64 = vmatpush1.xpose.msra.mxu0 0.0
    %65 = vmatprep.subr.mxu0 0.0
    %66 = vmatpush1.xpose.msra.mxu0 0.0
    %67 = vmatprep.subr.mxu0 0.0
    %68 = vmatpush1.xpose.msra.mxu0 0.0
    %69 = vmatprep.subr.mxu0 0.0
    %70 = vmatpush1.xpose.msra.mxu0 0.0
    %71 = vmatprep.subr.mxu0 0.0
    %72 = vmatpush1.xpose.msra.mxu0 0.0
    %73 = vmatprep.subr.mxu0 0.0
    %74 = vmatpush1.xpose.msra.mxu0 0.0
    %75 = vmatprep.subr.mxu0 0.0
    %76 = vmatpush1.xpose.msra.mxu0 0.0
    %77 = vmatprep.subr.mxu0 0.0
    %78 = vmatpush1.xpose.msra.mxu0 %v59
    %79 = vmatprep.subr.mxu0 0.0
    %80 = vmatpush1.xpose.msra.mxu0 %v56
    %81 = vmatprep.subr.mxu0 0.0
    %82 = vmatpush1.xpose.msra.mxu0 %v53
    %83 = vmatprep.subr.mxu0 0.0
    %84 = vmatpush1.xpose.msra.mxu0 %v50
    %85 = vmatprep.subr.mxu0 0.0
    %86 = vmatpush1.xpose.msra.mxu0 %v47
    %87 = vmatprep.subr.mxu0 0.0
    %88 = vmatpush1.xpose.msra.mxu0 %v44
    %89 = vmatprep.subr.mxu0 0.0
    %90 = vmatpush1.xpose.msra.mxu0 %v41
    %91 = vmatprep.subr.mxu0 0.0
    %92 = vmatpush1.xpose.msra.mxu0 %v38
    %93 = vmatprep.subr.mxu0 0.0
    %94 = vmatpush2.xpose.msra.mxu0 0.0
    %95 = vmatprep.subr.mxu0 0.0
    %96 = vmatpush2.xpose.msra.mxu0 0.0
    %97 = vmatprep.subr.mxu0 0.0
    %98 = vmatpush2.xpose.msra.mxu0 0.0
    %99 = vmatprep.subr.mxu0 0.0
    %100 = vmatpush2.xpose.msra.mxu0 0.0
    %101 = vmatprep.subr.mxu0 0.0
    %102 = vmatpush2.xpose.msra.mxu0 0.0
    %103 = vmatprep.subr.mxu0 0.0
    %104 = vmatpush2.xpose.msra.mxu0 0.0
    %105 = vmatprep.subr.mxu0 0.0
    %106 = vmatpush2.xpose.msra.mxu0 0.0
    %107 = vmatprep.subr.mxu0 0.0
    %108 = vmatpush2.xpose.msra.mxu0 0.0
    %109 = vmatprep.subr.mxu0 0.0
    %110 = vmatpush2.xpose.msra.mxu0 0.0
    %111 = vmatprep.subr.mxu0 0.0
    %112 = vmatpush2.xpose.msra.mxu0 0.0
    %113 = vmatprep.subr.mxu0 0.0
    %114 = vmatpush2.xpose.msra.mxu0 0.0
    %115 = vmatprep.subr.mxu0 0.0
    %116 = vmatpush2.xpose.msra.mxu0 0.0
    %117 = vmatprep.subr.mxu0 0.0
    %118 = vmatpush2.xpose.msra.mxu0 0.0
    %119 = vmatprep.subr.mxu0 0.0
    %120 = vmatpush2.xpose.msra.mxu0 0.0
    %121 = vmatprep.subr.mxu0 0.0
    %122 = vmatpush2.xpose.msra.mxu0 0.0
    %123 = vmatprep.subr.mxu0 0.0
    %124 = vmatpush2.xpose.msra.mxu0 0.0
    %125 = vmatprep.mubr.f32.mxu0 0.0
    %126 = vmatmul.mubr.f32.gmra.mxu0 %v32
    %v127 = vpop.f32.mrf.mxu0
    %v128 = vadd.f32 0.0, %v127
    %v129 = vpop.f32.mrf.mxu0
    %130 = vmatprep.mubr.f32.mxu0 0.0
    %131 = vmatmul.mubr.f32.gmra.mxu0 %v35
    %v132 = vpop.f32.mrf.mxu0
    %v133 = vadd.f32 0.0, %v132
    %v134 = vpop.f32.mrf.mxu0
    %135 = vdwg.mxu0
    %v137 = vlaneseq
    %v138 = vshrl.u32 %v137, 7
    %v139 = vsub.s32 0, %v138
    %v140 = vrot.slane %v29, %v139
    %v142 = vsub.f32 %v128, %v140
    %v143 = vsub.f32 %v133, %v140
    %vm144 = vcmask 523264
    %v145 = vsel %vm144, %v142, -inf
    %146 = vmax.xlane.f32.xlu0 %v145
    %v147 = vpop.xlane.xlu0 %146
    %v148 = vsel %vm144, %v143, -inf
    %149 = vmax.xlane.f32.xlu0 %v148
    %v150 = vpop.xlane.xlu0 %149
    %v151 = vlaneseq
    %v152 = vand.u32 %v151, 127
    %vm153 = vcmp.eq.f32.partialorder %v142, %v147
    %vm154 = vcmp.eq.f32.partialorder %v143, %v150
    %v155 = vsel %vm153, %v152, 64
    %v156 = vsel %vm154, %v152, 64
    %v157 = vsel %vm144, %v155, 2147483647
    %v158 = vand.u32 %v157, 65535
    %v159 = vshra.s32 %v157, 16
    %v160 = vcvt.s32.f32 %v158
    %v161 = vcvt.s32.f32 %v159
    %162 = vmin.xlane.f32.xlu0 %v161
    %v163 = vpop.xlane.xlu0 %162
    %vm164 = vcmp.eq.f32.partialorder %v161, %v163
    %v165 = vsel %vm164, %v160, inf
    %166 = vmin.xlane.f32.xlu0 %v165
    %v167 = vpop.xlane.xlu0 %166
    %v168 = vcvt.f32.s32 %v167
    %v169 = vcvt.f32.s32 %v163
    %v170 = vshll.u32 %v169, 16
    %v171 = vadd.s32 %v170, %v168
    %v172 = vsel %vm144, %v156, 2147483647
    %v173 = vand.u32 %v172, 65535
    %v174 = vshra.s32 %v172, 16
    %v175 = vcvt.s32.f32 %v173
    %v176 = vcvt.s32.f32 %v174
    %177 = vmin.xlane.f32.xlu0 %v176
    %v178 = vpop.xlane.xlu0 %177
    %vm179 = vcmp.eq.f32.partialorder %v176, %v178
    %v180 = vsel %vm179, %v175, inf
    %181 = vmin.xlane.f32.xlu0 %v180
    %v182 = vpop.xlane.xlu0 %181
    %v183 = vcvt.f32.s32 %v182
    %v184 = vcvt.f32.s32 %v178
    %v185 = vshll.u32 %v184, 16
    %v186 = vadd.s32 %v185, %v183
    %vm187 = vcmp.eq.s32.totalorder %v152, %v171
    %vm188 = vcmp.eq.s32.totalorder %v152, %v186
    %v189 = vsel %vm187, 1, 0
    %v190 = vsel %vm188, 1, 0
    %v191 = vcvt.s32.f32 %v189
    %v192 = vcvt.s32.f32 %v190
    %v193 = vpack.c.bf16 %v192, %v191
    %v195 = vsel %vm144, %v191, 0
    %v198 = vsel %vm144, %v192, 0
    %200 = vmatprep.subr.mxu0 0.0
    %201 = vmatpush1.msra.mxu0 0.0
    %202 = vmatprep.subr.mxu0 0.0
    %203 = vmatpush1.msra.mxu0 0.0
    %204 = vmatprep.subr.mxu0 0.0
    %205 = vmatpush1.msra.mxu0 0.0
    %206 = vmatprep.subr.mxu0 0.0
    %207 = vmatpush1.msra.mxu0 0.0
    %208 = vmatprep.subr.mxu0 0.0
    %209 = vmatpush1.msra.mxu0 0.0
    %210 = vmatprep.subr.mxu0 0.0
    %211 = vmatpush1.msra.mxu0 0.0
    %212 = vmatprep.subr.mxu0 0.0
    %213 = vmatpush1.msra.mxu0 0.0
    %214 = vmatprep.subr.mxu0 0.0
    %215 = vmatpush1.msra.mxu0 0.0
    %216 = vmatprep.subr.mxu0 0.0
    %217 = vmatpush1.msra.mxu0 %v28
    %218 = vmatprep.subr.mxu0 0.0
    %219 = vmatpush1.msra.mxu0 %v27
    %220 = vmatprep.subr.mxu0 0.0
    %221 = vmatpush1.msra.mxu0 %v26
    %222 = vmatprep.subr.mxu0 0.0
    %223 = vmatpush1.msra.mxu0 %v25
    %224 = vmatprep.subr.mxu0 0.0
    %225 = vmatpush1.msra.mxu0 %v24
    %226 = vmatprep.subr.mxu0 0.0
    %227 = vmatpush1.msra.mxu0 %v23
    %228 = vmatprep.subr.mxu0 0.0
    %229 = vmatpush1.msra.mxu0 %v22
    %230 = vmatprep.subr.mxu0 0.0
    %231 = vmatpush1.msra.mxu0 %v21
    %232 = vmatprep.subr.mxu0 0.0
    %233 = vmatpush2.msra.mxu0 0.0
    %234 = vmatprep.subr.mxu0 0.0
    %235 = vmatpush2.msra.mxu0 0.0
    %236 = vmatprep.subr.mxu0 0.0
    %237 = vmatpush2.msra.mxu0 0.0
    %238 = vmatprep.subr.mxu0 0.0
    %239 = vmatpush2.msra.mxu0 0.0
    %240 = vmatprep.subr.mxu0 0.0
    %241 = vmatpush2.msra.mxu0 0.0
    %242 = vmatprep.subr.mxu0 0.0
    %243 = vmatpush2.msra.mxu0 0.0
    %244 = vmatprep.subr.mxu0 0.0
    %245 = vmatpush2.msra.mxu0 0.0
    %246 = vmatprep.subr.mxu0 0.0
    %247 = vmatpush2.msra.mxu0 0.0
    %248 = vmatprep.subr.mxu0 0.0
    %249 = vmatpush2.msra.mxu0 0.0
    %250 = vmatprep.subr.mxu0 0.0
    %251 = vmatpush2.msra.mxu0 0.0
    %252 = vmatprep.subr.mxu0 0.0
    %253 = vmatpush2.msra.mxu0 0.0
    %254 = vmatprep.subr.mxu0 0.0
    %255 = vmatpush2.msra.mxu0 0.0
    %256 = vmatprep.subr.mxu0 0.0
    %257 = vmatpush2.msra.mxu0 0.0
    %258 = vmatprep.subr.mxu0 0.0
    %259 = vmatpush2.msra.mxu0 0.0
    %260 = vmatprep.subr.mxu0 0.0
    %261 = vmatpush2.msra.mxu0 0.0
    %262 = vmatprep.subr.mxu0 0.0
    %263 = vmatpush2.msra.mxu0 0.0
    %264 = vmatprep.mubr.f32.mxu0 0.0
    %265 = vmatmul.mubr.f32.gmra.mxu0 %v195
    %v266 = vpop.f32.mrf.mxu0
    %v267 = vadd.f32 0.0, %v266
    %v268 = vpop.f32.mrf.mxu0
    %269 = vmatprep.mubr.f32.mxu0 0.0
    %270 = vmatmul.mubr.f32.gmra.mxu0 %v198
    %v271 = vpop.f32.mrf.mxu0
    %v272 = vadd.f32 0.0, %v271
    %v273 = vpop.f32.mrf.mxu0
    %274 = vdwg.mxu0
    %275 = vst.msk [vmem:[#allocation2] sm:$0xff] %vm30, %v267
    %276 = vst.msk [vmem:[#allocation2 + $0x8] sm:$0xff] %vm30, %v272
    %v277 = vcvt.s32.f32 %v152
    %v278 = vpack.c.bf16 %v277, %v277
    %v280 = vsel %vm144, %v278, 0
    %v283 = vsel %vm144, %v193, 0
    %285 = vmatprep.subr.bf16.mxu0 0
    %286 = vmatpush1.bf16.xpose.msra.mxu0 0
    %287 = vmatprep.subr.bf16.mxu0 0
    %288 = vmatpush1.bf16.xpose.msra.mxu0 0
    %289 = vmatprep.subr.bf16.mxu0 0
    %290 = vmatpush1.bf16.xpose.msra.mxu0 0
    %291 = vmatprep.subr.bf16.mxu0 0
    %292 = vmatpush1.bf16.xpose.msra.mxu0 0
    %293 = vmatprep.subr.bf16.mxu0 0
    %294 = vmatpush1.bf16.xpose.msra.mxu0 0
    %295 = vmatprep.subr.bf16.mxu0 0
    %296 = vmatpush1.bf16.xpose.msra.mxu0 0
    %297 = vmatprep.subr.bf16.mxu0 0
    %298 = vmatpush1.bf16.xpose.msra.mxu0 0
    %299 = vmatprep.subr.bf16.mxu0 0
    %300 = vmatpush1.bf16.xpose.msra.mxu0 %v283
    %301 = vmatprep.subr.bf16.mxu0 0
    %302 = vmatpush2.bf16.xpose.msra.mxu0 0
    %303 = vmatprep.subr.bf16.mxu0 0
    %304 = vmatpush2.bf16.xpose.msra.mxu0 0
    %305 = vmatprep.subr.bf16.mxu0 0
    %306 = vmatpush2.bf16.xpose.msra.mxu0 0
    %307 = vmatprep.subr.bf16.mxu0 0
    %308 = vmatpush2.bf16.xpose.msra.mxu0 0
    %309 = vmatprep.subr.bf16.mxu0 0
    %310 = vmatpush2.bf16.xpose.msra.mxu0 0
    %311 = vmatprep.subr.bf16.mxu0 0
    %312 = vmatpush2.bf16.xpose.msra.mxu0 0
    %313 = vmatprep.subr.bf16.mxu0 0
    %314 = vmatpush2.bf16.xpose.msra.mxu0 0
    %315 = vmatprep.subr.bf16.mxu0 0
    %316 = vmatpush2.bf16.xpose.msra.mxu0 0
    %317 = vmatprep.mubr.bf16.mxu0 0
    %318 = vmatmul.mubr.bf16.gmra.mxu0 %v280
    %v319 = vpop.f32.mrf.mxu0
    %v320 = vadd.f32 0.0, %v319
    %v321 = vpop.f32.mrf.mxu0
    %v322 = vpop.f32.mrf.mxu0
    %v323 = vpop.f32.mrf.mxu0
    %324 = vdwg.mxu0
    %v325 = vadd.f32 %v320, 0.5
    %v326 = vcvt.f32.s32.to.zero.pseudo %v325
    %vm327 = vcmask 122880
    %328 = vst.msk [vmem:[#allocation4] sm:$0x1] %vm327, %v326
    // Predicated region
    $region14: #{tpu_custom_call.1} parent=1 // pred_check
      _
    $region15: #{tpu_custom_call.1} parent=1 // pred_check_branch
      %330 = sbr.rel (0) target = $region17
    $region16: #{tpu_custom_call.1} parent=1 // pred_region
      %s332 = ssub.s32 256, 256
      %333 = vsyncadd [#allocation3], %s332
      %s334 = sshll.u32 [#allocation2], 4
      %s335 = int_to_ptr.vmem [resolvable:$true] %s334
      %340 = dma.vmem_to_hbm [thread:$0]  %s335, 256, %s3, [#allocation3], 128, 128, 8
    $region17: #{tpu_custom_call.1} parent=1 // pred_fallthru
      _
    // Predicated region
    $region18: #{tpu_custom_call.1} parent=1 // pred_check
      _
    $region19: #{tpu_custom_call.1} parent=1 // pred_check_branch
      %342 = sbr.rel (0) target = $region21
    $region20: #{tpu_custom_call.1} parent=1 // pred_region
      %s344 = ssub.s32 16, 16
      %345 = vsyncadd [#allocation5], %s344
      %s347 = sshll.u32 [#allocation4], 4
      %s348 = int_to_ptr.vmem [resolvable:$true] %s347
      %350 = dma.vmem_to_hbm [thread:$0]  %s348, 16, %s4, [#allocation5]
    $region21: #{tpu_custom_call.1} parent=1 // pred_fallthru
      _
    // Predicated region
    $region22: #{tpu_custom_call.1} parent=1 // pred_check
      _
    $region23: #{tpu_custom_call.1} parent=1 // pred_check_branch
      %352 = sbr.rel (0) target = $region25
    $region24: #{tpu_custom_call.1} parent=1 // pred_region
      %353 = dma.done [#allocation3], 256
    $region25: #{tpu_custom_call.1} parent=1 // pred_fallthru
      _
    // Predicated region
    $region26: #{tpu_custom_call.1} parent=1 // pred_check
      _
    $region27: #{tpu_custom_call.1} parent=1 // pred_check_branch
      %355 = sbr.rel (0) target = $region29
    $region28: #{tpu_custom_call.1} parent=1 // pred_region
      %356 = dma.done [#allocation5], 16
    $region29: #{tpu_custom_call.1} parent=1 // pred_fallthru
      _
    %357 = vsyncpa [#allocation3], 1
    %358 = vsyncpa [#allocation5], 1

</llo_original>
